<compile_context>
chip_gen: v5e
topology: v5e:2x2
jax: 0.10.0
libtpu: 0.0.40
codegen_flags: <defaults>
</compile_context>

<pallas_src>
import functools

import jax
import jax.numpy as jnp
from jax.experimental import pallas as pl
from jax.experimental.pallas import tpu as pltpu


# ---------------------------------------------------------------------------
# Pallas kernel: gated mixture of per-expert projections (single invocation)
# ---------------------------------------------------------------------------
def _moe_proj_kernel(num_experts, batch, num_k, gate_ref, w_ref, x_ref, o_ref):
    # gate_ref: SMEM (B, E) f32       -- full table, scalar-indexed
    # w_ref:    VMEM (E, K, C, D) f32 -- all experts' weights (fetched once)
    # x_ref:    VMEM (B, K, D, L) f32 -- all inputs (fetched once)
    # o_ref:    VMEM (B, K, C, L) f32
    for k in range(num_k):                               # static loop (K = 4)
        # Per-expert weight tiles for this scan direction, hoisted out of the
        # batch loop.  Kept in f32: the gate fold runs on the f32 VPU path
        # (required on v5e), only the MXU operands are downcast.
        w_tiles = [w_ref[e, k] for e in range(num_experts)]
        for b in range(batch):                           # static loop (B = 2)
            # Fold the gating into the weights: (C, D) combined weight, f32.
            comb = gate_ref[b, 0] * w_tiles[0]
            for e in range(1, num_experts):
                comb = comb + gate_ref[b, e] * w_tiles[e]
            # Single MXU matmul per (b, k): (C, D) x (D, L) -> (C, L).
            # bf16 operands (cast in-kernel, free on the VPU), f32 accumulate.
            proj = jnp.dot(comb.astype(jnp.bfloat16),
                           x_ref[b, k].astype(jnp.bfloat16),
                           preferred_element_type=jnp.float32)
            o_ref[b, k] = proj


def moe_projection_pallas(xs, x_proj_weight, gate_weights):
    B, K, D, L = xs.shape
    E, K2, C, D2 = x_proj_weight.shape
    assert K2 == K and D2 == D

    xs_f32 = xs.astype(jnp.float32)              # no-op when already f32
    w_f32 = x_proj_weight.astype(jnp.float32)    # no-op when already f32
    gates = gate_weights.astype(jnp.float32)

    kernel = functools.partial(_moe_proj_kernel, E, B, K)

    # Post-gate-fold matmul FLOPs (the fold itself is negligible: E*B*K*C*D).
    cost = pl.CostEstimate(
        flops=2 * B * K * C * D * L,
        transcendentals=0,
        bytes_accessed=(xs_f32.size * 4 + w_f32.size * 4
                        + B * K * C * L * 4 + gates.size * 4),
    )

    return pl.pallas_call(
        kernel,
        out_shape=jax.ShapeDtypeStruct((B, K, C, L), jnp.float32),
        # Single invocation (no grid): whole arrays land in VMEM once.
        in_specs=[
            pl.BlockSpec(memory_space=pltpu.MemorySpace.SMEM),   # gates (B, E)
            pl.BlockSpec(memory_space=pltpu.MemorySpace.VMEM),   # W (E, K, C, D)
            pl.BlockSpec(memory_space=pltpu.MemorySpace.VMEM),   # xs (B, K, D, L)
        ],
        out_specs=pl.BlockSpec(memory_space=pltpu.MemorySpace.VMEM),
        cost_estimate=cost,
    )(gates, w_f32, xs_f32)


# ---------------------------------------------------------------------------
# NoisyTopkRouter (plain JAX glue: random noise, variable-k top-k, scatter)
# ---------------------------------------------------------------------------
def noisy_topk_router(mh_mean, mis_mask, w_route, b_route, w_noise, b_noise,
                      noise_key):
    # mh_mean: (B, D) = mean of xs over (k, l).
    # Matches the torch module exactly: softmax the routing logits, softmax the
    # (randn * softplus) noise term separately, then add.
    logits = jax.nn.softmax(mh_mean @ w_route.T + b_route, axis=-1)
    noise_logits = mh_mean @ w_noise.T + b_noise
    noise = (jax.random.normal(noise_key, logits.shape, logits.dtype)
             * jax.nn.softplus(noise_logits))
    noise = jax.nn.softmax(noise, axis=-1)
    noisy_logits = logits + noise

    # Per-sample variable-k top-k, scatter into zeros (non-top-k experts keep
    # value 0.0 -- same as the torch module), then softmax.
    # TODO(synk): the torch pad_sequence/scatter_ path pads indices with 0 and
    # values with 0.0, which can nondeterministically clobber expert 0's top-k
    # logit when k varies across the batch; we implement the clean semantics.
    order = jnp.argsort(-noisy_logits, axis=-1)
    ranks = jnp.argsort(order, axis=-1)                # rank of each expert
    keep = ranks < mis_mask[:, None].astype(jnp.int32)
    sparse_logits = jnp.where(keep, noisy_logits, 0.0)
    router_output = jax.nn.softmax(sparse_logits, axis=-1)
    return router_output, noisy_logits


def calculate_z_loss(logits):
    B = logits.shape[0]
    lse = jax.scipy.special.logsumexp(logits, axis=-1)
    return jnp.sum(lse ** 2) / B


# ---------------------------------------------------------------------------
# Full forward (MoEProjectionLayer.forward)
# ---------------------------------------------------------------------------
def moe_projection_forward(xs, mis_mask, params, noise_key):
    # xs: (B, K, D, L).  PyTorch does xs.permute(0,1,3,2).mean(dim=(1,2))
    # which is simply the mean over axes (K, L).
    mh_mean = jnp.mean(xs, axis=(1, 3))                 # (B, D)
    gate_weights, noisy_logits = noisy_topk_router(
        mh_mean, mis_mask,
        params["w_route"], params["b_route"],
        params["w_noise"], params["b_noise"],
        noise_key)
    final_output = moe_projection_pallas(
        xs, params["x_proj_weight"], gate_weights)      # (B, K, 16, L)
    z_loss = calculate_z_loss(noisy_logits)
    return final_output, z_loss, gate_weights


# ---------------------------------------------------------------------------
if __name__ == "__main__":
    # Small shapes consistent with the module.
    B, K, D, L = 2, 4, 32, 128          # batch, K directions, input_dim, seq len
    E, dt_rank, d_state = 4, 16, 16     # num_experts, dt_rank (must be 16), d_state

    key = jax.random.PRNGKey(0)
    k_x, k_w, k_r, k_rb, k_n, k_nb, k_noise = jax.random.split(key, 7)

    xs = jax.random.normal(k_x, (B, K, D, L), jnp.float32)
    mis_mask = jnp.array([2, 1], jnp.int32)             # per-sample top-k

    # Deterministic parameter init (Linear-like scale 1/sqrt(fan_in)).
    params = {
        "x_proj_weight": jax.random.uniform(
            k_w, (E, K, dt_rank, D), jnp.float32,
            minval=-1.0, maxval=1.0) / jnp.sqrt(D),
        "w_route": jax.random.uniform(
            k_r, (E, D), jnp.float32, minval=-1.0, maxval=1.0) / jnp.sqrt(D),
        "b_route": jax.random.uniform(
            k_rb, (E,), jnp.float32, minval=-1.0, maxval=1.0) / jnp.sqrt(D),
        "w_noise": jax.random.uniform(
            k_n, (E, D), jnp.float32, minval=-1.0, maxval=1.0) / jnp.sqrt(D),
        "b_noise": jax.random.uniform(
            k_nb, (E,), jnp.float32, minval=-1.0, maxval=1.0) / jnp.sqrt(D),
    }

    final_output, z_loss, gate_weights = moe_projection_forward(
        xs, mis_mask, params, k_noise)
    jax.block_until_ready((final_output, z_loss))

    # Pure-JAX f32 reference for the Pallas hot path (kernel's MXU operands are
    # bf16 with f32 accumulation, hence the relaxed tolerance).
    ref = jnp.einsum("be,ekcd,bkdl->bkcl",
                     gate_weights, params["x_proj_weight"], xs)
    assert final_output.shape == (B, K, 16, L)
    assert jnp.allclose(final_output, ref, atol=2e-2, rtol=2e-2)
    assert jnp.isfinite(z_loss)

    print("KERNEL_OK")
</pallas_src>

<mosaic_0001>
module attributes {stable_mosaic.version = 11 : i64} {
  func.func @_moe_proj_kernel(%arg0: memref<2x4xf32, #tpu.memory_space<smem>>, %arg1: memref<4x4x16x32xf32, #tpu.memory_space<vmem>>, %arg2: memref<2x4x32x128xf32, #tpu.memory_space<vmem>>, %arg3: memref<2x4x16x128xf32, #tpu.memory_space<vmem>>) attributes {dimension_semantics = [], scalar_prefetch = 0 : i64, scratch_operands = 0 : i64, tpu.core_type = #tpu.core_type<tc>} {
    %c0 = arith.constant 0 : index
    %c0_0 = arith.constant 0 : index
    %c0_1 = arith.constant 0 : index
    %c0_2 = arith.constant 0 : index
    %0 = vector.load %arg1[%c0, %c0_0, %c0_1, %c0_2] : memref<4x4x16x32xf32, #tpu.memory_space<vmem>>, vector<1x1x16x32xf32>
    %1 = vector.shape_cast %0 : vector<1x1x16x32xf32> to vector<16x32xf32>
    %c1 = arith.constant 1 : index
    %c0_3 = arith.constant 0 : index
    %c0_4 = arith.constant 0 : index
    %c0_5 = arith.constant 0 : index
    %2 = vector.load %arg1[%c1, %c0_3, %c0_4, %c0_5] : memref<4x4x16x32xf32, #tpu.memory_space<vmem>>, vector<1x1x16x32xf32>
    %3 = vector.shape_cast %2 : vector<1x1x16x32xf32> to vector<16x32xf32>
    %c2 = arith.constant 2 : index
    %c0_6 = arith.constant 0 : index
    %c0_7 = arith.constant 0 : index
    %c0_8 = arith.constant 0 : index
    %4 = vector.load %arg1[%c2, %c0_6, %c0_7, %c0_8] : memref<4x4x16x32xf32, #tpu.memory_space<vmem>>, vector<1x1x16x32xf32>
    %5 = vector.shape_cast %4 : vector<1x1x16x32xf32> to vector<16x32xf32>
    %c3 = arith.constant 3 : index
    %c0_9 = arith.constant 0 : index
    %c0_10 = arith.constant 0 : index
    %c0_11 = arith.constant 0 : index
    %6 = vector.load %arg1[%c3, %c0_9, %c0_10, %c0_11] : memref<4x4x16x32xf32, #tpu.memory_space<vmem>>, vector<1x1x16x32xf32>
    %7 = vector.shape_cast %6 : vector<1x1x16x32xf32> to vector<16x32xf32>
    %c0_12 = arith.constant 0 : index
    %c0_13 = arith.constant 0 : index
    %8 = memref.load %arg0[%c0_12, %c0_13] : memref<2x4xf32, #tpu.memory_space<smem>>
    %9 = vector.broadcast %8 : f32 to vector<16x32xf32>
    %10 = arith.mulf %9, %1 : vector<16x32xf32>
    %c0_14 = arith.constant 0 : index
    %c1_15 = arith.constant 1 : index
    %11 = memref.load %arg0[%c0_14, %c1_15] : memref<2x4xf32, #tpu.memory_space<smem>>
    %12 = vector.broadcast %11 : f32 to vector<16x32xf32>
    %13 = arith.mulf %12, %3 : vector<16x32xf32>
    %14 = arith.addf %10, %13 : vector<16x32xf32>
    %c0_16 = arith.constant 0 : index
    %c2_17 = arith.constant 2 : index
    %15 = memref.load %arg0[%c0_16, %c2_17] : memref<2x4xf32, #tpu.memory_space<smem>>
    %16 = vector.broadcast %15 : f32 to vector<16x32xf32>
    %17 = arith.mulf %16, %5 : vector<16x32xf32>
    %18 = arith.addf %14, %17 : vector<16x32xf32>
    %c0_18 = arith.constant 0 : index
    %c3_19 = arith.constant 3 : index
    %19 = memref.load %arg0[%c0_18, %c3_19] : memref<2x4xf32, #tpu.memory_space<smem>>
    %20 = vector.broadcast %19 : f32 to vector<16x32xf32>
    %21 = arith.mulf %20, %7 : vector<16x32xf32>
    %22 = arith.addf %18, %21 : vector<16x32xf32>
    %23 = arith.truncf %22 : vector<16x32xf32> to vector<16x32xbf16>
    %c0_20 = arith.constant 0 : index
    %c0_21 = arith.constant 0 : index
    %c0_22 = arith.constant 0 : index
    %c0_23 = arith.constant 0 : index
    %24 = vector.load %arg2[%c0_20, %c0_21, %c0_22, %c0_23] : memref<2x4x32x128xf32, #tpu.memory_space<vmem>>, vector<1x1x32x128xf32>
    %25 = vector.shape_cast %24 : vector<1x1x32x128xf32> to vector<32x128xf32>
    %26 = arith.truncf %25 : vector<32x128xf32> to vector<32x128xbf16>
    %cst = arith.constant dense<0.000000e+00> : vector<16x128xf32>
    %27 = tpu.matmul %23, %26, %cst {dimension_numbers = #tpu.dot_dimension_numbers<[1], [0], [0], [1], [0, 0, 1, 1], [], []>} : vector<16x32xbf16>, vector<32x128xbf16>, vector<16x128xf32> -> vector<16x128xf32>
    %c0_24 = arith.constant 0 : index
    %c0_25 = arith.constant 0 : index
    %c0_26 = arith.constant 0 : index
    %c0_27 = arith.constant 0 : index
    %28 = vector.load %arg3[%c0_24, %c0_25, %c0_26, %c0_27] : memref<2x4x16x128xf32, #tpu.memory_space<vmem>>, vector<1x1x16x128xf32>
    %29 = vector.shape_cast %28 : vector<1x1x16x128xf32> to vector<16x128xf32>
    %30 = vector.shape_cast %27 : vector<16x128xf32> to vector<1x1x16x128xf32>
    tpu.vector_store %arg3[%c0_24, %c0_25, %c0_26, %c0_27], %30 {strides = array<i32>} : memref<2x4x16x128xf32, #tpu.memory_space<vmem>>, vector<1x1x16x128xf32>,
    %c1_28 = arith.constant 1 : index
    %c0_29 = arith.constant 0 : index
    %31 = memref.load %arg0[%c1_28, %c0_29] : memref<2x4xf32, #tpu.memory_space<smem>>
    %32 = vector.broadcast %31 : f32 to vector<16x32xf32>
    %33 = arith.mulf %32, %1 : vector<16x32xf32>
    %c1_30 = arith.constant 1 : index
    %c1_31 = arith.constant 1 : index
    %34 = memref.load %arg0[%c1_30, %c1_31] : memref<2x4xf32, #tpu.memory_space<smem>>
    %35 = vector.broadcast %34 : f32 to vector<16x32xf32>
    %36 = arith.mulf %35, %3 : vector<16x32xf32>
    %37 = arith.addf %33, %36 : vector<16x32xf32>
    %c1_32 = arith.constant 1 : index
    %c2_33 = arith.constant 2 : index
    %38 = memref.load %arg0[%c1_32, %c2_33] : memref<2x4xf32, #tpu.memory_space<smem>>
    %39 = vector.broadcast %38 : f32 to vector<16x32xf32>
    %40 = arith.mulf %39, %5 : vector<16x32xf32>
    %41 = arith.addf %37, %40 : vector<16x32xf32>
    %c1_34 = arith.constant 1 : index
    %c3_35 = arith.constant 3 : index
    %42 = memref.load %arg0[%c1_34, %c3_35] : memref<2x4xf32, #tpu.memory_space<smem>>
    %43 = vector.broadcast %42 : f32 to vector<16x32xf32>
    %44 = arith.mulf %43, %7 : vector<16x32xf32>
    %45 = arith.addf %41, %44 : vector<16x32xf32>
    %46 = arith.truncf %45 : vector<16x32xf32> to vector<16x32xbf16>
    %c1_36 = arith.constant 1 : index
    %c0_37 = arith.constant 0 : index
    %c0_38 = arith.constant 0 : index
    %c0_39 = arith.constant 0 : index
    %47 = vector.load %arg2[%c1_36, %c0_37, %c0_38, %c0_39] : memref<2x4x32x128xf32, #tpu.memory_space<vmem>>, vector<1x1x32x128xf32>
    %48 = vector.shape_cast %47 : vector<1x1x32x128xf32> to vector<32x128xf32>
    %49 = arith.truncf %48 : vector<32x128xf32> to vector<32x128xbf16>
    %cst_40 = arith.constant dense<0.000000e+00> : vector<16x128xf32>
    %50 = tpu.matmul %46, %49, %cst_40 {dimension_numbers = #tpu.dot_dimension_numbers<[1], [0], [0], [1], [0, 0, 1, 1], [], []>} : vector<16x32xbf16>, vector<32x128xbf16>, vector<16x128xf32> -> vector<16x128xf32>
    %c1_41 = arith.constant 1 : index
    %c0_42 = arith.constant 0 : index
    %c0_43 = arith.constant 0 : index
    %c0_44 = arith.constant 0 : index
    %51 = vector.load %arg3[%c1_41, %c0_42, %c0_43, %c0_44] : memref<2x4x16x128xf32, #tpu.memory_space<vmem>>, vector<1x1x16x128xf32>
    %52 = vector.shape_cast %51 : vector<1x1x16x128xf32> to vector<16x128xf32>
    %53 = vector.shape_cast %50 : vector<16x128xf32> to vector<1x1x16x128xf32>
    tpu.vector_store %arg3[%c1_41, %c0_42, %c0_43, %c0_44], %53 {strides = array<i32>} : memref<2x4x16x128xf32, #tpu.memory_space<vmem>>, vector<1x1x16x128xf32>,
    %c0_45 = arith.constant 0 : index
    %c1_46 = arith.constant 1 : index
    %c0_47 = arith.constant 0 : index
    %c0_48 = arith.constant 0 : index
    %54 = vector.load %arg1[%c0_45, %c1_46, %c0_47, %c0_48] : memref<4x4x16x32xf32, #tpu.memory_space<vmem>>, vector<1x1x16x32xf32>
    %55 = vector.shape_cast %54 : vector<1x1x16x32xf32> to vector<16x32xf32>
    %c1_49 = arith.constant 1 : index
    %c1_50 = arith.constant 1 : index
    %c0_51 = arith.constant 0 : index
    %c0_52 = arith.constant 0 : index
    %56 = vector.load %arg1[%c1_49, %c1_50, %c0_51, %c0_52] : memref<4x4x16x32xf32, #tpu.memory_space<vmem>>, vector<1x1x16x32xf32>
    %57 = vector.shape_cast %56 : vector<1x1x16x32xf32> to vector<16x32xf32>
    %c2_53 = arith.constant 2 : index
    %c1_54 = arith.constant 1 : index
    %c0_55 = arith.constant 0 : index
    %c0_56 = arith.constant 0 : index
    %58 = vector.load %arg1[%c2_53, %c1_54, %c0_55, %c0_56] : memref<4x4x16x32xf32, #tpu.memory_space<vmem>>, vector<1x1x16x32xf32>
    %59 = vector.shape_cast %58 : vector<1x1x16x32xf32> to vector<16x32xf32>
    %c3_57 = arith.constant 3 : index
    %c1_58 = arith.constant 1 : index
    %c0_59 = arith.constant 0 : index
    %c0_60 = arith.constant 0 : index
    %60 = vector.load %arg1[%c3_57, %c1_58, %c0_59, %c0_60] : memref<4x4x16x32xf32, #tpu.memory_space<vmem>>, vector<1x1x16x32xf32>
    %61 = vector.shape_cast %60 : vector<1x1x16x32xf32> to vector<16x32xf32>
    %c0_61 = arith.constant 0 : index
    %c0_62 = arith.constant 0 : index
    %62 = memref.load %arg0[%c0_61, %c0_62] : memref<2x4xf32, #tpu.memory_space<smem>>
    %63 = vector.broadcast %62 : f32 to vector<16x32xf32>
    %64 = arith.mulf %63, %55 : vector<16x32xf32>
    %c0_63 = arith.constant 0 : index
    %c1_64 = arith.constant 1 : index
    %65 = memref.load %arg0[%c0_63, %c1_64] : memref<2x4xf32, #tpu.memory_space<smem>>
    %66 = vector.broadcast %65 : f32 to vector<16x32xf32>
    %67 = arith.mulf %66, %57 : vector<16x32xf32>
    %68 = arith.addf %64, %67 : vector<16x32xf32>
    %c0_65 = arith.constant 0 : index
    %c2_66 = arith.constant 2 : index
    %69 = memref.load %arg0[%c0_65, %c2_66] : memref<2x4xf32, #tpu.memory_space<smem>>
    %70 = vector.broadcast %69 : f32 to vector<16x32xf32>
    %71 = arith.mulf %70, %59 : vector<16x32xf32>
    %72 = arith.addf %68, %71 : vector<16x32xf32>
    %c0_67 = arith.constant 0 : index
    %c3_68 = arith.constant 3 : index
    %73 = memref.load %arg0[%c0_67, %c3_68] : memref<2x4xf32, #tpu.memory_space<smem>>
    %74 = vector.broadcast %73 : f32 to vector<16x32xf32>
    %75 = arith.mulf %74, %61 : vector<16x32xf32>
    %76 = arith.addf %72, %75 : vector<16x32xf32>
    %77 = arith.truncf %76 : vector<16x32xf32> to vector<16x32xbf16>
    %c0_69 = arith.constant 0 : index
    %c1_70 = arith.constant 1 : index
    %c0_71 = arith.constant 0 : index
    %c0_72 = arith.constant 0 : index
    %78 = vector.load %arg2[%c0_69, %c1_70, %c0_71, %c0_72] : memref<2x4x32x128xf32, #tpu.memory_space<vmem>>, vector<1x1x32x128xf32>
    %79 = vector.shape_cast %78 : vector<1x1x32x128xf32> to vector<32x128xf32>
    %80 = arith.truncf %79 : vector<32x128xf32> to vector<32x128xbf16>
    %cst_73 = arith.constant dense<0.000000e+00> : vector<16x128xf32>
    %81 = tpu.matmul %77, %80, %cst_73 {dimension_numbers = #tpu.dot_dimension_numbers<[1], [0], [0], [1], [0, 0, 1, 1], [], []>} : vector<16x32xbf16>, vector<32x128xbf16>, vector<16x128xf32> -> vector<16x128xf32>
    %c0_74 = arith.constant 0 : index
    %c1_75 = arith.constant 1 : index
    %c0_76 = arith.constant 0 : index
    %c0_77 = arith.constant 0 : index
    %82 = vector.load %arg3[%c0_74, %c1_75, %c0_76, %c0_77] : memref<2x4x16x128xf32, #tpu.memory_space<vmem>>, vector<1x1x16x128xf32>
    %83 = vector.shape_cast %82 : vector<1x1x16x128xf32> to vector<16x128xf32>
    %84 = vector.shape_cast %81 : vector<16x128xf32> to vector<1x1x16x128xf32>
    tpu.vector_store %arg3[%c0_74, %c1_75, %c0_76, %c0_77], %84 {strides = array<i32>} : memref<2x4x16x128xf32, #tpu.memory_space<vmem>>, vector<1x1x16x128xf32>,
    %c1_78 = arith.constant 1 : index
    %c0_79 = arith.constant 0 : index
    %85 = memref.load %arg0[%c1_78, %c0_79] : memref<2x4xf32, #tpu.memory_space<smem>>
    %86 = vector.broadcast %85 : f32 to vector<16x32xf32>
    %87 = arith.mulf %86, %55 : vector<16x32xf32>
    %c1_80 = arith.constant 1 : index
    %c1_81 = arith.constant 1 : index
    %88 = memref.load %arg0[%c1_80, %c1_81] : memref<2x4xf32, #tpu.memory_space<smem>>
    %89 = vector.broadcast %88 : f32 to vector<16x32xf32>
    %90 = arith.mulf %89, %57 : vector<16x32xf32>
    %91 = arith.addf %87, %90 : vector<16x32xf32>
    %c1_82 = arith.constant 1 : index
    %c2_83 = arith.constant 2 : index
    %92 = memref.load %arg0[%c1_82, %c2_83] : memref<2x4xf32, #tpu.memory_space<smem>>
    %93 = vector.broadcast %92 : f32 to vector<16x32xf32>
    %94 = arith.mulf %93, %59 : vector<16x32xf32>
    %95 = arith.addf %91, %94 : vector<16x32xf32>
    %c1_84 = arith.constant 1 : index
    %c3_85 = arith.constant 3 : index
    %96 = memref.load %arg0[%c1_84, %c3_85] : memref<2x4xf32, #tpu.memory_space<smem>>
    %97 = vector.broadcast %96 : f32 to vector<16x32xf32>
    %98 = arith.mulf %97, %61 : vector<16x32xf32>
    %99 = arith.addf %95, %98 : vector<16x32xf32>
    %100 = arith.truncf %99 : vector<16x32xf32> to vector<16x32xbf16>
    %c1_86 = arith.constant 1 : index
    %c1_87 = arith.constant 1 : index
    %c0_88 = arith.constant 0 : index
    %c0_89 = arith.constant 0 : index
    %101 = vector.load %arg2[%c1_86, %c1_87, %c0_88, %c0_89] : memref<2x4x32x128xf32, #tpu.memory_space<vmem>>, vector<1x1x32x128xf32>
    %102 = vector.shape_cast %101 : vector<1x1x32x128xf32> to vector<32x128xf32>
    %103 = arith.truncf %102 : vector<32x128xf32> to vector<32x128xbf16>
    %cst_90 = arith.constant dense<0.000000e+00> : vector<16x128xf32>
    %104 = tpu.matmul %100, %103, %cst_90 {dimension_numbers = #tpu.dot_dimension_numbers<[1], [0], [0], [1], [0, 0, 1, 1], [], []>} : vector<16x32xbf16>, vector<32x128xbf16>, vector<16x128xf32> -> vector<16x128xf32>
    %c1_91 = arith.constant 1 : index
    %c1_92 = arith.constant 1 : index
    %c0_93 = arith.constant 0 : index
    %c0_94 = arith.constant 0 : index
    %105 = vector.load %arg3[%c1_91, %c1_92, %c0_93, %c0_94] : memref<2x4x16x128xf32, #tpu.memory_space<vmem>>, vector<1x1x16x128xf32>
    %106 = vector.shape_cast %105 : vector<1x1x16x128xf32> to vector<16x128xf32>
    %107 = vector.shape_cast %104 : vector<16x128xf32> to vector<1x1x16x128xf32>
    tpu.vector_store %arg3[%c1_91, %c1_92, %c0_93, %c0_94], %107 {strides = array<i32>} : memref<2x4x16x128xf32, #tpu.memory_space<vmem>>, vector<1x1x16x128xf32>,
    %c0_95 = arith.constant 0 : index
    %c2_96 = arith.constant 2 : index
    %c0_97 = arith.constant 0 : index
    %c0_98 = arith.constant 0 : index
    %108 = vector.load %arg1[%c0_95, %c2_96, %c0_97, %c0_98] : memref<4x4x16x32xf32, #tpu.memory_space<vmem>>, vector<1x1x16x32xf32>
    %109 = vector.shape_cast %108 : vector<1x1x16x32xf32> to vector<16x32xf32>
    %c1_99 = arith.constant 1 : index
    %c2_100 = arith.constant 2 : index
    %c0_101 = arith.constant 0 : index
    %c0_102 = arith.constant 0 : index
    %110 = vector.load %arg1[%c1_99, %c2_100, %c0_101, %c0_102] : memref<4x4x16x32xf32, #tpu.memory_space<vmem>>, vector<1x1x16x32xf32>
    %111 = vector.shape_cast %110 : vector<1x1x16x32xf32> to vector<16x32xf32>
    %c2_103 = arith.constant 2 : index
    %c2_104 = arith.constant 2 : index
    %c0_105 = arith.constant 0 : index
    %c0_106 = arith.constant 0 : index
    %112 = vector.load %arg1[%c2_103, %c2_104, %c0_105, %c0_106] : memref<4x4x16x32xf32, #tpu.memory_space<vmem>>, vector<1x1x16x32xf32>
    %113 = vector.shape_cast %112 : vector<1x1x16x32xf32> to vector<16x32xf32>
    %c3_107 = arith.constant 3 : index
    %c2_108 = arith.constant 2 : index
    %c0_109 = arith.constant 0 : index
    %c0_110 = arith.constant 0 : index
    %114 = vector.load %arg1[%c3_107, %c2_108, %c0_109, %c0_110] : memref<4x4x16x32xf32, #tpu.memory_space<vmem>>, vector<1x1x16x32xf32>
    %115 = vector.shape_cast %114 : vector<1x1x16x32xf32> to vector<16x32xf32>
    %c0_111 = arith.constant 0 : index
    %c0_112 = arith.constant 0 : index
    %116 = memref.load %arg0[%c0_111, %c0_112] : memref<2x4xf32, #tpu.memory_space<smem>>
    %117 = vector.broadcast %116 : f32 to vector<16x32xf32>
    %118 = arith.mulf %117, %109 : vector<16x32xf32>
    %c0_113 = arith.constant 0 : index
    %c1_114 = arith.constant 1 : index
    %119 = memref.load %arg0[%c0_113, %c1_114] : memref<2x4xf32, #tpu.memory_space<smem>>
    %120 = vector.broadcast %119 : f32 to vector<16x32xf32>
    %121 = arith.mulf %120, %111 : vector<16x32xf32>
    %122 = arith.addf %118, %121 : vector<16x32xf32>
    %c0_115 = arith.constant 0 : index
    %c2_116 = arith.constant 2 : index
    %123 = memref.load %arg0[%c0_115, %c2_116] : memref<2x4xf32, #tpu.memory_space<smem>>
    %124 = vector.broadcast %123 : f32 to vector<16x32xf32>
    %125 = arith.mulf %124, %113 : vector<16x32xf32>
    %126 = arith.addf %122, %125 : vector<16x32xf32>
    %c0_117 = arith.constant 0 : index
    %c3_118 = arith.constant 3 : index
    %127 = memref.load %arg0[%c0_117, %c3_118] : memref<2x4xf32, #tpu.memory_space<smem>>
    %128 = vector.broadcast %127 : f32 to vector<16x32xf32>
    %129 = arith.mulf %128, %115 : vector<16x32xf32>
    %130 = arith.addf %126, %129 : vector<16x32xf32>
    %131 = arith.truncf %130 : vector<16x32xf32> to vector<16x32xbf16>
    %c0_119 = arith.constant 0 : index
    %c2_120 = arith.constant 2 : index
    %c0_121 = arith.constant 0 : index
    %c0_122 = arith.constant 0 : index
    %132 = vector.load %arg2[%c0_119, %c2_120, %c0_121, %c0_122] : memref<2x4x32x128xf32, #tpu.memory_space<vmem>>, vector<1x1x32x128xf32>
    %133 = vector.shape_cast %132 : vector<1x1x32x128xf32> to vector<32x128xf32>
    %134 = arith.truncf %133 : vector<32x128xf32> to vector<32x128xbf16>
    %cst_123 = arith.constant dense<0.000000e+00> : vector<16x128xf32>
    %135 = tpu.matmul %131, %134, %cst_123 {dimension_numbers = #tpu.dot_dimension_numbers<[1], [0], [0], [1], [0, 0, 1, 1], [], []>} : vector<16x32xbf16>, vector<32x128xbf16>, vector<16x128xf32> -> vector<16x128xf32>
    %c0_124 = arith.constant 0 : index
    %c2_125 = arith.constant 2 : index
    %c0_126 = arith.constant 0 : index
    %c0_127 = arith.constant 0 : index
    %136 = vector.load %arg3[%c0_124, %c2_125, %c0_126, %c0_127] : memref<2x4x16x128xf32, #tpu.memory_space<vmem>>, vector<1x1x16x128xf32>
    %137 = vector.shape_cast %136 : vector<1x1x16x128xf32> to vector<16x128xf32>
    %138 = vector.shape_cast %135 : vector<16x128xf32> to vector<1x1x16x128xf32>
    tpu.vector_store %arg3[%c0_124, %c2_125, %c0_126, %c0_127], %138 {strides = array<i32>} : memref<2x4x16x128xf32, #tpu.memory_space<vmem>>, vector<1x1x16x128xf32>,
    %c1_128 = arith.constant 1 : index
    %c0_129 = arith.constant 0 : index
    %139 = memref.load %arg0[%c1_128, %c0_129] : memref<2x4xf32, #tpu.memory_space<smem>>
    %140 = vector.broadcast %139 : f32 to vector<16x32xf32>
    %141 = arith.mulf %140, %109 : vector<16x32xf32>
    %c1_130 = arith.constant 1 : index
    %c1_131 = arith.constant 1 : index
    %142 = memref.load %arg0[%c1_130, %c1_131] : memref<2x4xf32, #tpu.memory_space<smem>>
    %143 = vector.broadcast %142 : f32 to vector<16x32xf32>
    %144 = arith.mulf %143, %111 : vector<16x32xf32>
    %145 = arith.addf %141, %144 : vector<16x32xf32>
    %c1_132 = arith.constant 1 : index
    %c2_133 = arith.constant 2 : index
    %146 = memref.load %arg0[%c1_132, %c2_133] : memref<2x4xf32, #tpu.memory_space<smem>>
    %147 = vector.broadcast %146 : f32 to vector<16x32xf32>
    %148 = arith.mulf %147, %113 : vector<16x32xf32>
    %149 = arith.addf %145, %148 : vector<16x32xf32>
    %c1_134 = arith.constant 1 : index
    %c3_135 = arith.constant 3 : index
    %150 = memref.load %arg0[%c1_134, %c3_135] : memref<2x4xf32, #tpu.memory_space<smem>>
    %151 = vector.broadcast %150 : f32 to vector<16x32xf32>
    %152 = arith.mulf %151, %115 : vector<16x32xf32>
    %153 = arith.addf %149, %152 : vector<16x32xf32>
    %154 = arith.truncf %153 : vector<16x32xf32> to vector<16x32xbf16>
    %c1_136 = arith.constant 1 : index
    %c2_137 = arith.constant 2 : index
    %c0_138 = arith.constant 0 : index
    %c0_139 = arith.constant 0 : index
    %155 = vector.load %arg2[%c1_136, %c2_137, %c0_138, %c0_139] : memref<2x4x32x128xf32, #tpu.memory_space<vmem>>, vector<1x1x32x128xf32>
    %156 = vector.shape_cast %155 : vector<1x1x32x128xf32> to vector<32x128xf32>
    %157 = arith.truncf %156 : vector<32x128xf32> to vector<32x128xbf16>
    %cst_140 = arith.constant dense<0.000000e+00> : vector<16x128xf32>
    %158 = tpu.matmul %154, %157, %cst_140 {dimension_numbers = #tpu.dot_dimension_numbers<[1], [0], [0], [1], [0, 0, 1, 1], [], []>} : vector<16x32xbf16>, vector<32x128xbf16>, vector<16x128xf32> -> vector<16x128xf32>
    %c1_141 = arith.constant 1 : index
    %c2_142 = arith.constant 2 : index
    %c0_143 = arith.constant 0 : index
    %c0_144 = arith.constant 0 : index
    %159 = vector.load %arg3[%c1_141, %c2_142, %c0_143, %c0_144] : memref<2x4x16x128xf32, #tpu.memory_space<vmem>>, vector<1x1x16x128xf32>
    %160 = vector.shape_cast %159 : vector<1x1x16x128xf32> to vector<16x128xf32>
    %161 = vector.shape_cast %158 : vector<16x128xf32> to vector<1x1x16x128xf32>
    tpu.vector_store %arg3[%c1_141, %c2_142, %c0_143, %c0_144], %161 {strides = array<i32>} : memref<2x4x16x128xf32, #tpu.memory_space<vmem>>, vector<1x1x16x128xf32>,
    %c0_145 = arith.constant 0 : index
    %c3_146 = arith.constant 3 : index
    %c0_147 = arith.constant 0 : index
    %c0_148 = arith.constant 0 : index
    %162 = vector.load %arg1[%c0_145, %c3_146, %c0_147, %c0_148] : memref<4x4x16x32xf32, #tpu.memory_space<vmem>>, vector<1x1x16x32xf32>
    %163 = vector.shape_cast %162 : vector<1x1x16x32xf32> to vector<16x32xf32>
    %c1_149 = arith.constant 1 : index
    %c3_150 = arith.constant 3 : index
    %c0_151 = arith.constant 0 : index
    %c0_152 = arith.constant 0 : index
    %164 = vector.load %arg1[%c1_149, %c3_150, %c0_151, %c0_152] : memref<4x4x16x32xf32, #tpu.memory_space<vmem>>, vector<1x1x16x32xf32>
    %165 = vector.shape_cast %164 : vector<1x1x16x32xf32> to vector<16x32xf32>
    %c2_153 = arith.constant 2 : index
    %c3_154 = arith.constant 3 : index
    %c0_155 = arith.constant 0 : index
    %c0_156 = arith.constant 0 : index
    %166 = vector.load %arg1[%c2_153, %c3_154, %c0_155, %c0_156] : memref<4x4x16x32xf32, #tpu.memory_space<vmem>>, vector<1x1x16x32xf32>
    %167 = vector.shape_cast %166 : vector<1x1x16x32xf32> to vector<16x32xf32>
    %c3_157 = arith.constant 3 : index
    %c3_158 = arith.constant 3 : index
    %c0_159 = arith.constant 0 : index
    %c0_160 = arith.constant 0 : index
    %168 = vector.load %arg1[%c3_157, %c3_158, %c0_159, %c0_160] : memref<4x4x16x32xf32, #tpu.memory_space<vmem>>, vector<1x1x16x32xf32>
    %169 = vector.shape_cast %168 : vector<1x1x16x32xf32> to vector<16x32xf32>
    %c0_161 = arith.constant 0 : index
    %c0_162 = arith.constant 0 : index
    %170 = memref.load %arg0[%c0_161, %c0_162] : memref<2x4xf32, #tpu.memory_space<smem>>
    %171 = vector.broadcast %170 : f32 to vector<16x32xf32>
    %172 = arith.mulf %171, %163 : vector<16x32xf32>
    %c0_163 = arith.constant 0 : index
    %c1_164 = arith.constant 1 : index
    %173 = memref.load %arg0[%c0_163, %c1_164] : memref<2x4xf32, #tpu.memory_space<smem>>
    %174 = vector.broadcast %173 : f32 to vector<16x32xf32>
    %175 = arith.mulf %174, %165 : vector<16x32xf32>
    %176 = arith.addf %172, %175 : vector<16x32xf32>
    %c0_165 = arith.constant 0 : index
    %c2_166 = arith.constant 2 : index
    %177 = memref.load %arg0[%c0_165, %c2_166] : memref<2x4xf32, #tpu.memory_space<smem>>
    %178 = vector.broadcast %177 : f32 to vector<16x32xf32>
    %179 = arith.mulf %178, %167 : vector<16x32xf32>
    %180 = arith.addf %176, %179 : vector<16x32xf32>
    %c0_167 = arith.constant 0 : index
    %c3_168 = arith.constant 3 : index
    %181 = memref.load %arg0[%c0_167, %c3_168] : memref<2x4xf32, #tpu.memory_space<smem>>
    %182 = vector.broadcast %181 : f32 to vector<16x32xf32>
    %183 = arith.mulf %182, %169 : vector<16x32xf32>
    %184 = arith.addf %180, %183 : vector<16x32xf32>
    %185 = arith.truncf %184 : vector<16x32xf32> to vector<16x32xbf16>
    %c0_169 = arith.constant 0 : index
    %c3_170 = arith.constant 3 : index
    %c0_171 = arith.constant 0 : index
    %c0_172 = arith.constant 0 : index
    %186 = vector.load %arg2[%c0_169, %c3_170, %c0_171, %c0_172] : memref<2x4x32x128xf32, #tpu.memory_space<vmem>>, vector<1x1x32x128xf32>
    %187 = vector.shape_cast %186 : vector<1x1x32x128xf32> to vector<32x128xf32>
    %188 = arith.truncf %187 : vector<32x128xf32> to vector<32x128xbf16>
    %cst_173 = arith.constant dense<0.000000e+00> : vector<16x128xf32>
    %189 = tpu.matmul %185, %188, %cst_173 {dimension_numbers = #tpu.dot_dimension_numbers<[1], [0], [0], [1], [0, 0, 1, 1], [], []>} : vector<16x32xbf16>, vector<32x128xbf16>, vector<16x128xf32> -> vector<16x128xf32>
    %c0_174 = arith.constant 0 : index
    %c3_175 = arith.constant 3 : index
    %c0_176 = arith.constant 0 : index
    %c0_177 = arith.constant 0 : index
    %190 = vector.load %arg3[%c0_174, %c3_175, %c0_176, %c0_177] : memref<2x4x16x128xf32, #tpu.memory_space<vmem>>, vector<1x1x16x128xf32>
    %191 = vector.shape_cast %190 : vector<1x1x16x128xf32> to vector<16x128xf32>
    %192 = vector.shape_cast %189 : vector<16x128xf32> to vector<1x1x16x128xf32>
    tpu.vector_store %arg3[%c0_174, %c3_175, %c0_176, %c0_177], %192 {strides = array<i32>} : memref<2x4x16x128xf32, #tpu.memory_space<vmem>>, vector<1x1x16x128xf32>,
    %c1_178 = arith.constant 1 : index
    %c0_179 = arith.constant 0 : index
    %193 = memref.load %arg0[%c1_178, %c0_179] : memref<2x4xf32, #tpu.memory_space<smem>>
    %194 = vector.broadcast %193 : f32 to vector<16x32xf32>
    %195 = arith.mulf %194, %163 : vector<16x32xf32>
    %c1_180 = arith.constant 1 : index
    %c1_181 = arith.constant 1 : index
    %196 = memref.load %arg0[%c1_180, %c1_181] : memref<2x4xf32, #tpu.memory_space<smem>>
    %197 = vector.broadcast %196 : f32 to vector<16x32xf32>
    %198 = arith.mulf %197, %165 : vector<16x32xf32>
    %199 = arith.addf %195, %198 : vector<16x32xf32>
    %c1_182 = arith.constant 1 : index
    %c2_183 = arith.constant 2 : index
    %200 = memref.load %arg0[%c1_182, %c2_183] : memref<2x4xf32, #tpu.memory_space<smem>>
    %201 = vector.broadcast %200 : f32 to vector<16x32xf32>
    %202 = arith.mulf %201, %167 : vector<16x32xf32>
    %203 = arith.addf %199, %202 : vector<16x32xf32>
    %c1_184 = arith.constant 1 : index
    %c3_185 = arith.constant 3 : index
    %204 = memref.load %arg0[%c1_184, %c3_185] : memref<2x4xf32, #tpu.memory_space<smem>>
    %205 = vector.broadcast %204 : f32 to vector<16x32xf32>
    %206 = arith.mulf %205, %169 : vector<16x32xf32>
    %207 = arith.addf %203, %206 : vector<16x32xf32>
    %208 = arith.truncf %207 : vector<16x32xf32> to vector<16x32xbf16>
    %c1_186 = arith.constant 1 : index
    %c3_187 = arith.constant 3 : index
    %c0_188 = arith.constant 0 : index
    %c0_189 = arith.constant 0 : index
    %209 = vector.load %arg2[%c1_186, %c3_187, %c0_188, %c0_189] : memref<2x4x32x128xf32, #tpu.memory_space<vmem>>, vector<1x1x32x128xf32>
    %210 = vector.shape_cast %209 : vector<1x1x32x128xf32> to vector<32x128xf32>
    %211 = arith.truncf %210 : vector<32x128xf32> to vector<32x128xbf16>
    %cst_190 = arith.constant dense<0.000000e+00> : vector<16x128xf32>
    %212 = tpu.matmul %208, %211, %cst_190 {dimension_numbers = #tpu.dot_dimension_numbers<[1], [0], [0], [1], [0, 0, 1, 1], [], []>} : vector<16x32xbf16>, vector<32x128xbf16>, vector<16x128xf32> -> vector<16x128xf32>
    %c1_191 = arith.constant 1 : index
    %c3_192 = arith.constant 3 : index
    %c0_193 = arith.constant 0 : index
    %c0_194 = arith.constant 0 : index
    %213 = vector.load %arg3[%c1_191, %c3_192, %c0_193, %c0_194] : memref<2x4x16x128xf32, #tpu.memory_space<vmem>>, vector<1x1x16x128xf32>
    %214 = vector.shape_cast %213 : vector<1x1x16x128xf32> to vector<16x128xf32>
    %215 = vector.shape_cast %212 : vector<16x128xf32> to vector<1x1x16x128xf32>
    tpu.vector_store %arg3[%c1_191, %c3_192, %c0_193, %c0_194], %215 {strides = array<i32>} : memref<2x4x16x128xf32, #tpu.memory_space<vmem>>, vector<1x1x16x128xf32>,
    return
  }
}

</mosaic_0001>

<llo_original>
// kernel: tpu_custom_call.1
$region0: #{tpu_custom_call.1}
  #allocation0 [shape = 'u32[]', space=smem, size = 0x4, offset = 0x4, fixed_abs, tag = 'smem constant byte address 0x4 - core index']
  #allocation1 [shape = 'u32[72,128]{1,0:T(1,128)}', space=vmem, size = 0x9000, scoped, tag = 'internal scratch']
  %s0 = inlined_call_operand.hbm [shape: f32[2,4], index: 0, kind: input, shape index: {}]
  %s1 = inlined_call_operand.hbm [shape: f32[4,4,16,32], index: 1, kind: input, shape index: {}]
  %s2 = inlined_call_operand.hbm [shape: f32[2,4,32,128], index: 2, kind: input, shape index: {}]
  %s3 = inlined_call_operand.hbm [shape: f32[2,4,16,128], index: 3, kind: output, shape index: {}]
  %s4 = sld [smem:[#allocation0]]
  $region34: #{tpu_custom_call.1} parent=0
    _
  %s6 = ssub.s32 1, %s4
  %s7 = scalar_select 0, %s6, %s4
  $region1: #{tpu_custom_call.1} parent=0
    #allocation2 [shape = 'u8[1024]{0}', space=smem, size = 0x400, scoped, tag = 'input window, operand 0, single buffered']
    #allocation3 [shape = 's32[1]{0}', space=sflag, size = 0x4, scoped, tag = 'scoped memory for tpu_custom_call.1']
    #allocation4 [shape = 's32[1]{0}', space=sflag, size = 0x4, scoped, tag = 'scoped memory for tpu_custom_call.1']
    #allocation5 [shape = 's32[1]{0}', space=sflag, size = 0x4, scoped, tag = 'scoped memory for tpu_custom_call.1']
    #allocation6 [shape = 'u8[131072]{0}', space=vmem, size = 0x20000, scoped, tag = 'input window, operand 1, single buffered']
    #allocation7 [shape = 'u8[131072]{0}', space=vmem, size = 0x20000, scoped, tag = 'input window, operand 2, single buffered']
    #allocation8 [shape = 's32[1]{0}', space=sflag, size = 0x4, scoped, tag = 'scoped memory for tpu_custom_call.1']
    #allocation9 [shape = 'u8[65536]{0}', space=vmem, size = 0x10000, scoped, tag = 'output window, operand 0, single buffered']
    %8 = vsyncpa [#allocation5], 0
    %9 = vsyncpa [#allocation3], 0
    %10 = vsyncpa [#allocation8], 0
    %11 = vsyncpa [#allocation4], 0
    // Predicated region
    $region2: #{tpu_custom_call.1} parent=1 // pred_check
      _
    $region3: #{tpu_custom_call.1} parent=1 // pred_check_branch
      %13 = sbr.rel (0) target = $region5
    $region4: #{tpu_custom_call.1} parent=1 // pred_region
      %15 = vsyncadd [#allocation5], 0
      %s17 = sshll.u32 %s0, 4
      %s18 = int_to_ptr.hbm [resolvable:$true] %s17
      %20 = dma.hbm_to_smem %s18, 32, [#allocation2], [#allocation5]
    $region5: #{tpu_custom_call.1} parent=1 // pred_fallthru
      _
    // Predicated region
    $region6: #{tpu_custom_call.1} parent=1 // pred_check
      _
    $region7: #{tpu_custom_call.1} parent=1 // pred_check_branch
      %22 = sbr.rel (0) target = $region9
    $region8: #{tpu_custom_call.1} parent=1 // pred_region
      %24 = vsyncadd [#allocation3], 0
      %s25 = sshll.u32 %s1, 4
      %s26 = int_to_ptr.hbm [resolvable:$true] %s25
      %s27 = sshll.u32 [#allocation6], 4
      %s28 = int_to_ptr.vmem [resolvable:$true] %s27
      %33 = dma.hbm_to_vmem [thread:$0]  %s26, 4096, %s28, [#allocation3], 128, 128, 8
    $region9: #{tpu_custom_call.1} parent=1 // pred_fallthru
      _
    // Predicated region
    $region10: #{tpu_custom_call.1} parent=1 // pred_check
      _
    $region11: #{tpu_custom_call.1} parent=1 // pred_check_branch
      %35 = sbr.rel (0) target = $region13
    $region12: #{tpu_custom_call.1} parent=1 // pred_region
      %37 = vsyncadd [#allocation8], 0
      %s38 = sshll.u32 %s2, 4
      %s39 = int_to_ptr.hbm [resolvable:$true] %s38
      %s40 = sshll.u32 [#allocation7], 4
      %s41 = int_to_ptr.vmem [resolvable:$true] %s40
      %46 = dma.hbm_to_vmem [thread:$0]  %s39, 4096, %s41, [#allocation8], 128, 128, 8
    $region13: #{tpu_custom_call.1} parent=1 // pred_fallthru
      _
    // Predicated region
    $region14: #{tpu_custom_call.1} parent=1 // pred_check
      _
    $region15: #{tpu_custom_call.1} parent=1 // pred_check_branch
      %48 = sbr.rel (0) target = $region17
    $region16: #{tpu_custom_call.1} parent=1 // pred_region
      %50 = dma.done [#allocation5], 32
    $region17: #{tpu_custom_call.1} parent=1 // pred_fallthru
      _
    // Predicated region
    $region18: #{tpu_custom_call.1} parent=1 // pred_check
      _
    $region19: #{tpu_custom_call.1} parent=1 // pred_check_branch
      %52 = sbr.rel (0) target = $region21
    $region20: #{tpu_custom_call.1} parent=1 // pred_region
      %54 = dma.done [#allocation3], 4096
    $region21: #{tpu_custom_call.1} parent=1 // pred_fallthru
      _
    // Predicated region
    $region22: #{tpu_custom_call.1} parent=1 // pred_check
      _
    $region23: #{tpu_custom_call.1} parent=1 // pred_check_branch
      %56 = sbr.rel (0) target = $region25
    $region24: #{tpu_custom_call.1} parent=1 // pred_region
      %58 = dma.done [#allocation8], 4096
    $region25: #{tpu_custom_call.1} parent=1 // pred_fallthru
      _
    %59 = sfence
    %v61 = vld [vmem:[#allocation6] sm:$0xff]
    %v62 = vld [vmem:[#allocation6 + $0x8] sm:$0xff]
    %s63 = scalar_lea.vmem [#allocation6], 64
    %v64 = vld [vmem:[%s63] sm:$0xff]
    %v65 = vld [vmem:[%s63 + $0x8] sm:$0xff]
    %s66 = scalar_lea.vmem [#allocation6], 128
    %v67 = vld [vmem:[%s66] sm:$0xff]
    %v68 = vld [vmem:[%s66 + $0x8] sm:$0xff]
    %s69 = scalar_lea.vmem [#allocation6], 192
    %v70 = vld [vmem:[%s69] sm:$0xff]
    %v71 = vld [vmem:[%s69 + $0x8] sm:$0xff]
    %s72 = sld [smem:[#allocation2]]
    %v73 = vstv %s72
    %v74 = vmul.f32 %v73, %v61
    %v75 = vmul.f32 %v73, %v62
    %s76 = sld [smem:[#allocation2 + $0x1]]
    %v77 = vstv %s76
    %v78 = vmul.f32 %v77, %v64
    %v79 = vmul.f32 %v77, %v65
    %v80 = vadd.f32 %v74, %v78
    %v81 = vadd.f32 %v75, %v79
    %s82 = sld [smem:[#allocation2 + $0x2]]
    %v83 = vstv %s82
    %v84 = vmul.f32 %v83, %v67
    %v85 = vmul.f32 %v83, %v68
    %v86 = vadd.f32 %v80, %v84
    %v87 = vadd.f32 %v81, %v85
    %s88 = sld [smem:[#allocation2 + $0x3]]
    %v89 = vstv %s88
    %v90 = vmul.f32 %v89, %v70
    %v91 = vmul.f32 %v89, %v71
    %v92 = vadd.f32 %v86, %v90
    %v93 = vadd.f32 %v87, %v91
    %v94 = vpack.c.bf16 %v93, %v92
    %v95 = vld [vmem:[#allocation7] sm:$0xff]
    %v96 = vld [vmem:[#allocation7 + $0x8] sm:$0xff]
    %v97 = vld [vmem:[#allocation7 + $0x10] sm:$0xff]
    %v98 = vld [vmem:[#allocation7 + $0x18] sm:$0xff]
    %v99 = vpack.c.bf16 %v96, %v95
    %v100 = vpack.c.bf16 %v98, %v97
    %vm101 = vcmask 261120
    %v103 = vsel %vm101, %v94, 0
    %105 = vmatpush.bf16.msra.mxu0 0
    %106 = vmatpush.bf16.msra.mxu0 0
    %107 = vmatpush.bf16.msra.mxu0 0
    %108 = vmatpush.bf16.msra.mxu0 0
    %109 = vmatpush.bf16.msra.mxu0 0
    %110 = vmatpush.bf16.msra.mxu0 0
    %111 = vmatpush.bf16.msra.mxu0 %v100
    %112 = vmatpush.bf16.msra.mxu0 %v99
    %113 = vmatmul.bf16.gmra.mxu0 %v103
    %v114 = vpop.f32.mrf.mxu0
    %v115 = vadd.f32 0.0, %v114
    %v116 = vpop.f32.mrf.mxu0
    %v117 = vadd.f32 0.0, %v116
    %118 = vdwg.mxu0
    %119 = vst [vmem:[#allocation9] sm:$0xff] %v115
    %120 = vst [vmem:[#allocation9 + $0x8] sm:$0xff] %v117
    %s121 = sld [smem:[#allocation2 + $0x80]]
    %v122 = vstv %s121
    %v123 = vmul.f32 %v122, %v61
    %v124 = vmul.f32 %v122, %v62
    %s125 = sld [smem:[#allocation2 + $0x81]]
    %v126 = vstv %s125
    %v127 = vmul.f32 %v126, %v64
    %v128 = vmul.f32 %v126, %v65
    %v129 = vadd.f32 %v123, %v127
    %v130 = vadd.f32 %v124, %v128
    %s131 = sld [smem:[#allocation2 + $0x82]]
    %v132 = vstv %s131
    %v133 = vmul.f32 %v132, %v67
    %v134 = vmul.f32 %v132, %v68
    %v135 = vadd.f32 %v129, %v133
    %v136 = vadd.f32 %v130, %v134
    %s137 = sld [smem:[#allocation2 + $0x83]]
    %v138 = vstv %s137
    %v139 = vmul.f32 %v138, %v70
    %v140 = vmul.f32 %v138, %v71
    %v141 = vadd.f32 %v135, %v139
    %v142 = vadd.f32 %v136, %v140
    %v143 = vpack.c.bf16 %v142, %v141
    %s144 = scalar_lea.vmem [#allocation7], 128
    %v145 = vld [vmem:[%s144] sm:$0xff]
    %v146 = vld [vmem:[%s144 + $0x8] sm:$0xff]
    %v147 = vld [vmem:[%s144 + $0x10] sm:$0xff]
    %v148 = vld [vmem:[%s144 + $0x18] sm:$0xff]
    %v149 = vpack.c.bf16 %v146, %v145
    %v150 = vpack.c.bf16 %v148, %v147
    %v152 = vsel %vm101, %v143, 0
    %154 = vmatpush.bf16.msra.mxu0 0
    %155 = vmatpush.bf16.msra.mxu0 0
    %156 = vmatpush.bf16.msra.mxu0 0
    %157 = vmatpush.bf16.msra.mxu0 0
    %158 = vmatpush.bf16.msra.mxu0 0
    %159 = vmatpush.bf16.msra.mxu0 0
    %160 = vmatpush.bf16.msra.mxu0 %v150
    %161 = vmatpush.bf16.msra.mxu0 %v149
    %162 = vmatmul.bf16.gmra.mxu0 %v152
    %v163 = vpop.f32.mrf.mxu0
    %v164 = vadd.f32 0.0, %v163
    %v165 = vpop.f32.mrf.mxu0
    %v166 = vadd.f32 0.0, %v165
    %167 = vdwg.mxu0
    %s168 = scalar_lea.vmem [#allocation9], 64
    %169 = vst [vmem:[%s168] sm:$0xff] %v164
    %170 = vst [vmem:[%s168 + $0x8] sm:$0xff] %v166
    %s171 = scalar_lea.vmem [#allocation6], 16
    %v172 = vld [vmem:[%s171] sm:$0xff]
    %v173 = vld [vmem:[%s171 + $0x8] sm:$0xff]
    %s174 = scalar_lea.vmem [#allocation6], 80
    %v175 = vld [vmem:[%s174] sm:$0xff]
    %v176 = vld [vmem:[%s174 + $0x8] sm:$0xff]
    %s177 = scalar_lea.vmem [#allocation6], 144
    %v178 = vld [vmem:[%s177] sm:$0xff]
    %v179 = vld [vmem:[%s177 + $0x8] sm:$0xff]
    %s180 = scalar_lea.vmem [#allocation6], 208
    %v181 = vld [vmem:[%s180] sm:$0xff]
    %v182 = vld [vmem:[%s180 + $0x8] sm:$0xff]
    %s183 = sld [smem:[#allocation2]]
    %v184 = vstv %s183
    %v185 = vmul.f32 %v184, %v172
    %v186 = vmul.f32 %v184, %v173
    %s187 = sld [smem:[#allocation2 + $0x1]]
    %v188 = vstv %s187
    %v189 = vmul.f32 %v188, %v175
    %v190 = vmul.f32 %v188, %v176
    %v191 = vadd.f32 %v185, %v189
    %v192 = vadd.f32 %v186, %v190
    %s193 = sld [smem:[#allocation2 + $0x2]]
    %v194 = vstv %s193
    %v195 = vmul.f32 %v194, %v178
    %v196 = vmul.f32 %v194, %v179
    %v197 = vadd.f32 %v191, %v195
    %v198 = vadd.f32 %v192, %v196
    %s199 = sld [smem:[#allocation2 + $0x3]]
    %v200 = vstv %s199
    %v201 = vmul.f32 %v200, %v181
    %v202 = vmul.f32 %v200, %v182
    %v203 = vadd.f32 %v197, %v201
    %v204 = vadd.f32 %v198, %v202
    %v205 = vpack.c.bf16 %v204, %v203
    %s206 = scalar_lea.vmem [#allocation7], 32
    %v207 = vld [vmem:[%s206] sm:$0xff]
    %v208 = vld [vmem:[%s206 + $0x8] sm:$0xff]
    %v209 = vld [vmem:[%s206 + $0x10] sm:$0xff]
    %v210 = vld [vmem:[%s206 + $0x18] sm:$0xff]
    %v211 = vpack.c.bf16 %v208, %v207
    %v212 = vpack.c.bf16 %v210, %v209
    %v214 = vsel %vm101, %v205, 0
    %216 = vmatpush.bf16.msra.mxu0 0
    %217 = vmatpush.bf16.msra.mxu0 0
    %218 = vmatpush.bf16.msra.mxu0 0
    %219 = vmatpush.bf16.msra.mxu0 0
    %220 = vmatpush.bf16.msra.mxu0 0
    %221 = vmatpush.bf16.msra.mxu0 0
    %222 = vmatpush.bf16.msra.mxu0 %v212
    %223 = vmatpush.bf16.msra.mxu0 %v211
    %224 = vmatmul.bf16.gmra.mxu0 %v214
    %v225 = vpop.f32.mrf.mxu0
    %v226 = vadd.f32 0.0, %v225
    %v227 = vpop.f32.mrf.mxu0
    %v228 = vadd.f32 0.0, %v227
    %229 = vdwg.mxu0
    %s230 = scalar_lea.vmem [#allocation9], 16
    %231 = vst [vmem:[%s230] sm:$0xff] %v226
    %232 = vst [vmem:[%s230 + $0x8] sm:$0xff] %v228
    %s233 = sld [smem:[#allocation2 + $0x80]]
    %v234 = vstv %s233
    %v235 = vmul.f32 %v234, %v172
    %v236 = vmul.f32 %v234, %v173
    %s237 = sld [smem:[#allocation2 + $0x81]]
    %v238 = vstv %s237
    %v239 = vmul.f32 %v238, %v175
    %v240 = vmul.f32 %v238, %v176
    %v241 = vadd.f32 %v235, %v239
    %v242 = vadd.f32 %v236, %v240
    %s243 = sld [smem:[#allocation2 + $0x82]]
    %v244 = vstv %s243
    %v245 = vmul.f32 %v244, %v178
    %v246 = vmul.f32 %v244, %v179
    %v247 = vadd.f32 %v241, %v245
    %v248 = vadd.f32 %v242, %v246
    %s249 = sld [smem:[#allocation2 + $0x83]]
    %v250 = vstv %s249
    %v251 = vmul.f32 %v250, %v181
    %v252 = vmul.f32 %v250, %v182
    %v253 = vadd.f32 %v247, %v251
    %v254 = vadd.f32 %v248, %v252
    %v255 = vpack.c.bf16 %v254, %v253
    %s256 = scalar_lea.vmem [#allocation7], 160
    %v257 = vld [vmem:[%s256] sm:$0xff]
    %v258 = vld [vmem:[%s256 + $0x8] sm:$0xff]
    %v259 = vld [vmem:[%s256 + $0x10] sm:$0xff]
    %v260 = vld [vmem:[%s256 + $0x18] sm:$0xff]
    %v261 = vpack.c.bf16 %v258, %v257
    %v262 = vpack.c.bf16 %v260, %v259
    %v264 = vsel %vm101, %v255, 0
    %266 = vmatpush.bf16.msra.mxu0 0
    %267 = vmatpush.bf16.msra.mxu0 0
    %268 = vmatpush.bf16.msra.mxu0 0
    %269 = vmatpush.bf16.msra.mxu0 0
    %270 = vmatpush.bf16.msra.mxu0 0
    %271 = vmatpush.bf16.msra.mxu0 0
    %272 = vmatpush.bf16.msra.mxu0 %v262
    %273 = vmatpush.bf16.msra.mxu0 %v261
    %274 = vmatmul.bf16.gmra.mxu0 %v264
    %v275 = vpop.f32.mrf.mxu0
    %v276 = vadd.f32 0.0, %v275
    %v277 = vpop.f32.mrf.mxu0
    %v278 = vadd.f32 0.0, %v277
    %279 = vdwg.mxu0
    %s280 = scalar_lea.vmem [#allocation9], 80
    %281 = vst [vmem:[%s280] sm:$0xff] %v276
    %282 = vst [vmem:[%s280 + $0x8] sm:$0xff] %v278
    %s283 = scalar_lea.vmem [#allocation6], 32
    %v284 = vld [vmem:[%s283] sm:$0xff]
    %v285 = vld [vmem:[%s283 + $0x8] sm:$0xff]
    %s286 = scalar_lea.vmem [#allocation6], 96
    %v287 = vld [vmem:[%s286] sm:$0xff]
    %v288 = vld [vmem:[%s286 + $0x8] sm:$0xff]
    %s289 = scalar_lea.vmem [#allocation6], 160
    %v290 = vld [vmem:[%s289] sm:$0xff]
    %v291 = vld [vmem:[%s289 + $0x8] sm:$0xff]
    %s292 = scalar_lea.vmem [#allocation6], 224
    %v293 = vld [vmem:[%s292] sm:$0xff]
    %v294 = vld [vmem:[%s292 + $0x8] sm:$0xff]
    %s295 = sld [smem:[#allocation2]]
    %v296 = vstv %s295
    %v297 = vmul.f32 %v296, %v284
    %v298 = vmul.f32 %v296, %v285
    %s299 = sld [smem:[#allocation2 + $0x1]]
    %v300 = vstv %s299
    %v301 = vmul.f32 %v300, %v287
    %v302 = vmul.f32 %v300, %v288
    %v303 = vadd.f32 %v297, %v301
    %v304 = vadd.f32 %v298, %v302
    %s305 = sld [smem:[#allocation2 + $0x2]]
    %v306 = vstv %s305
    %v307 = vmul.f32 %v306, %v290
    %v308 = vmul.f32 %v306, %v291
    %v309 = vadd.f32 %v303, %v307
    %v310 = vadd.f32 %v304, %v308
    %s311 = sld [smem:[#allocation2 + $0x3]]
    %v312 = vstv %s311
    %v313 = vmul.f32 %v312, %v293
    %v314 = vmul.f32 %v312, %v294
    %v315 = vadd.f32 %v309, %v313
    %v316 = vadd.f32 %v310, %v314
    %v317 = vpack.c.bf16 %v316, %v315
    %s318 = scalar_lea.vmem [#allocation7], 64
    %v319 = vld [vmem:[%s318] sm:$0xff]
    %v320 = vld [vmem:[%s318 + $0x8] sm:$0xff]
    %v321 = vld [vmem:[%s318 + $0x10] sm:$0xff]
    %v322 = vld [vmem:[%s318 + $0x18] sm:$0xff]
    %v323 = vpack.c.bf16 %v320, %v319
    %v324 = vpack.c.bf16 %v322, %v321
    %v326 = vsel %vm101, %v317, 0
    %328 = vmatpush.bf16.msra.mxu0 0
    %329 = vmatpush.bf16.msra.mxu0 0
    %330 = vmatpush.bf16.msra.mxu0 0
    %331 = vmatpush.bf16.msra.mxu0 0
    %332 = vmatpush.bf16.msra.mxu0 0
    %333 = vmatpush.bf16.msra.mxu0 0
    %334 = vmatpush.bf16.msra.mxu0 %v324
    %335 = vmatpush.bf16.msra.mxu0 %v323
    %336 = vmatmul.bf16.gmra.mxu0 %v326
    %v337 = vpop.f32.mrf.mxu0
    %v338 = vadd.f32 0.0, %v337
    %v339 = vpop.f32.mrf.mxu0
    %v340 = vadd.f32 0.0, %v339
    %341 = vdwg.mxu0
    %s342 = scalar_lea.vmem [#allocation9], 32
    %343 = vst [vmem:[%s342] sm:$0xff] %v338
    %344 = vst [vmem:[%s342 + $0x8] sm:$0xff] %v340
    %s345 = sld [smem:[#allocation2 + $0x80]]
    %v346 = vstv %s345
    %v347 = vmul.f32 %v346, %v284
    %v348 = vmul.f32 %v346, %v285
    %s349 = sld [smem:[#allocation2 + $0x81]]
    %v350 = vstv %s349
    %v351 = vmul.f32 %v350, %v287
    %v352 = vmul.f32 %v350, %v288
    %v353 = vadd.f32 %v347, %v351
    %v354 = vadd.f32 %v348, %v352
    %s355 = sld [smem:[#allocation2 + $0x82]]
    %v356 = vstv %s355
    %v357 = vmul.f32 %v356, %v290
    %v358 = vmul.f32 %v356, %v291
    %v359 = vadd.f32 %v353, %v357
    %v360 = vadd.f32 %v354, %v358
    %s361 = sld [smem:[#allocation2 + $0x83]]
    %v362 = vstv %s361
    %v363 = vmul.f32 %v362, %v293
    %v364 = vmul.f32 %v362, %v294
    %v365 = vadd.f32 %v359, %v363
    %v366 = vadd.f32 %v360, %v364
    %v367 = vpack.c.bf16 %v366, %v365
    %s368 = scalar_lea.vmem [#allocation7], 192
    %v369 = vld [vmem:[%s368] sm:$0xff]
    %v370 = vld [vmem:[%s368 + $0x8] sm:$0xff]
    %v371 = vld [vmem:[%s368 + $0x10] sm:$0xff]
    %v372 = vld [vmem:[%s368 + $0x18] sm:$0xff]
    %v373 = vpack.c.bf16 %v370, %v369
    %v374 = vpack.c.bf16 %v372, %v371
    %v376 = vsel %vm101, %v367, 0
    %378 = vmatpush.bf16.msra.mxu0 0
    %379 = vmatpush.bf16.msra.mxu0 0
    %380 = vmatpush.bf16.msra.mxu0 0
    %381 = vmatpush.bf16.msra.mxu0 0
    %382 = vmatpush.bf16.msra.mxu0 0
    %383 = vmatpush.bf16.msra.mxu0 0
    %384 = vmatpush.bf16.msra.mxu0 %v374
    %385 = vmatpush.bf16.msra.mxu0 %v373
    %386 = vmatmul.bf16.gmra.mxu0 %v376
    %v387 = vpop.f32.mrf.mxu0
    %v388 = vadd.f32 0.0, %v387
    %v389 = vpop.f32.mrf.mxu0
    %v390 = vadd.f32 0.0, %v389
    %391 = vdwg.mxu0
    %s392 = scalar_lea.vmem [#allocation9], 96
    %393 = vst [vmem:[%s392] sm:$0xff] %v388
    %394 = vst [vmem:[%s392 + $0x8] sm:$0xff] %v390
    %s395 = scalar_lea.vmem [#allocation6], 48
    %v396 = vld [vmem:[%s395] sm:$0xff]
    %v397 = vld [vmem:[%s395 + $0x8] sm:$0xff]
    %s398 = scalar_lea.vmem [#allocation6], 112
    %v399 = vld [vmem:[%s398] sm:$0xff]
    %v400 = vld [vmem:[%s398 + $0x8] sm:$0xff]
    %s401 = scalar_lea.vmem [#allocation6], 176
    %v402 = vld [vmem:[%s401] sm:$0xff]
    %v403 = vld [vmem:[%s401 + $0x8] sm:$0xff]
    %s404 = scalar_lea.vmem [#allocation6], 240
    %v405 = vld [vmem:[%s404] sm:$0xff]
    %v406 = vld [vmem:[%s404 + $0x8] sm:$0xff]
    %s407 = sld [smem:[#allocation2]]
    %v408 = vstv %s407
    %v409 = vmul.f32 %v408, %v396
    %v410 = vmul.f32 %v408, %v397
    %s411 = sld [smem:[#allocation2 + $0x1]]
    %v412 = vstv %s411
    %v413 = vmul.f32 %v412, %v399
    %v414 = vmul.f32 %v412, %v400
    %v415 = vadd.f32 %v409, %v413
    %v416 = vadd.f32 %v410, %v414
    %s417 = sld [smem:[#allocation2 + $0x2]]
    %v418 = vstv %s417
    %v419 = vmul.f32 %v418, %v402
    %v420 = vmul.f32 %v418, %v403
    %v421 = vadd.f32 %v415, %v419
    %v422 = vadd.f32 %v416, %v420
    %s423 = sld [smem:[#allocation2 + $0x3]]
    %v424 = vstv %s423
    %v425 = vmul.f32 %v424, %v405
    %v426 = vmul.f32 %v424, %v406
    %v427 = vadd.f32 %v421, %v425
    %v428 = vadd.f32 %v422, %v426
    %v429 = vpack.c.bf16 %v428, %v427
    %s430 = scalar_lea.vmem [#allocation7], 96
    %v431 = vld [vmem:[%s430] sm:$0xff]
    %v432 = vld [vmem:[%s430 + $0x8] sm:$0xff]
    %v433 = vld [vmem:[%s430 + $0x10] sm:$0xff]
    %v434 = vld [vmem:[%s430 + $0x18] sm:$0xff]
    %v435 = vpack.c.bf16 %v432, %v431
    %v436 = vpack.c.bf16 %v434, %v433
    %v438 = vsel %vm101, %v429, 0
    %440 = vmatpush.bf16.msra.mxu0 0
    %441 = vmatpush.bf16.msra.mxu0 0
    %442 = vmatpush.bf16.msra.mxu0 0
    %443 = vmatpush.bf16.msra.mxu0 0
    %444 = vmatpush.bf16.msra.mxu0 0
    %445 = vmatpush.bf16.msra.mxu0 0
    %446 = vmatpush.bf16.msra.mxu0 %v436
    %447 = vmatpush.bf16.msra.mxu0 %v435
    %448 = vmatmul.bf16.gmra.mxu0 %v438
    %v449 = vpop.f32.mrf.mxu0
    %v450 = vadd.f32 0.0, %v449
    %v451 = vpop.f32.mrf.mxu0
    %v452 = vadd.f32 0.0, %v451
    %453 = vdwg.mxu0
    %s454 = scalar_lea.vmem [#allocation9], 48
    %455 = vst [vmem:[%s454] sm:$0xff] %v450
    %456 = vst [vmem:[%s454 + $0x8] sm:$0xff] %v452
    %s457 = sld [smem:[#allocation2 + $0x80]]
    %v458 = vstv %s457
    %v459 = vmul.f32 %v458, %v396
    %v460 = vmul.f32 %v458, %v397
    %s461 = sld [smem:[#allocation2 + $0x81]]
    %v462 = vstv %s461
    %v463 = vmul.f32 %v462, %v399
    %v464 = vmul.f32 %v462, %v400
    %v465 = vadd.f32 %v459, %v463
    %v466 = vadd.f32 %v460, %v464
    %s467 = sld [smem:[#allocation2 + $0x82]]
    %v468 = vstv %s467
    %v469 = vmul.f32 %v468, %v402
    %v470 = vmul.f32 %v468, %v403
    %v471 = vadd.f32 %v465, %v469
    %v472 = vadd.f32 %v466, %v470
    %s473 = sld [smem:[#allocation2 + $0x83]]
    %v474 = vstv %s473
    %v475 = vmul.f32 %v474, %v405
    %v476 = vmul.f32 %v474, %v406
    %v477 = vadd.f32 %v471, %v475
    %v478 = vadd.f32 %v472, %v476
    %v479 = vpack.c.bf16 %v478, %v477
    %s480 = scalar_lea.vmem [#allocation7], 224
    %v481 = vld [vmem:[%s480] sm:$0xff]
    %v482 = vld [vmem:[%s480 + $0x8] sm:$0xff]
    %v483 = vld [vmem:[%s480 + $0x10] sm:$0xff]
    %v484 = vld [vmem:[%s480 + $0x18] sm:$0xff]
    %v485 = vpack.c.bf16 %v482, %v481
    %v486 = vpack.c.bf16 %v484, %v483
    %v488 = vsel %vm101, %v479, 0
    %490 = vmatpush.bf16.msra.mxu0 0
    %491 = vmatpush.bf16.msra.mxu0 0
    %492 = vmatpush.bf16.msra.mxu0 0
    %493 = vmatpush.bf16.msra.mxu0 0
    %494 = vmatpush.bf16.msra.mxu0 0
    %495 = vmatpush.bf16.msra.mxu0 0
    %496 = vmatpush.bf16.msra.mxu0 %v486
    %497 = vmatpush.bf16.msra.mxu0 %v485
    %498 = vmatmul.bf16.gmra.mxu0 %v488
    %v499 = vpop.f32.mrf.mxu0
    %v500 = vadd.f32 0.0, %v499
    %v501 = vpop.f32.mrf.mxu0
    %v502 = vadd.f32 0.0, %v501
    %503 = vdwg.mxu0
    %s504 = scalar_lea.vmem [#allocation9], 112
    %505 = vst [vmem:[%s504] sm:$0xff] %v500
    %506 = vst [vmem:[%s504 + $0x8] sm:$0xff] %v502
    // Predicated region
    $region26: #{tpu_custom_call.1} parent=1 // pred_check
      _
    $region27: #{tpu_custom_call.1} parent=1 // pred_check_branch
      %508 = sbr.rel (0) target = $region29
    $region28: #{tpu_custom_call.1} parent=1 // pred_region
      %510 = vsyncadd [#allocation4], 0
      %s511 = sshll.u32 [#allocation9], 4
      %s512 = int_to_ptr.vmem [resolvable:$true] %s511
      %s513 = sshll.u32 %s3, 4
      %s514 = int_to_ptr.hbm [resolvable:$true] %s513
      %519 = dma.vmem_to_hbm [thread:$0]  %s512, 2048, %s514, [#allocation4], 128, 128, 8
    $region29: #{tpu_custom_call.1} parent=1 // pred_fallthru
      _
    // Predicated region
    $region30: #{tpu_custom_call.1} parent=1 // pred_check
      _
    $region31: #{tpu_custom_call.1} parent=1 // pred_check_branch
      %521 = sbr.rel (0) target = $region33
    $region32: #{tpu_custom_call.1} parent=1 // pred_region
      %523 = dma.done [#allocation4], 2048
    $region33: #{tpu_custom_call.1} parent=1 // pred_fallthru
      _
    %524 = vsyncpa [#allocation3], 1
    %525 = vsyncpa [#allocation8], 1
    %526 = vsyncpa [#allocation4], 1
    %527 = vsyncpa [#allocation5], 1

</llo_original>
